<compile_context>
chip_gen: v7x
topology: tpu7x:2x2x1
jax: 0.10.0
libtpu: 0.0.40
codegen_flags: <defaults>
</compile_context>

<pallas_src>
import jax
import jax.numpy as jnp
import numpy as np
from jax.experimental import pallas as pl
from jax.experimental.pallas import tpu as pltpu


# ----------------------------------------------------------------------------
# Kernel
# ----------------------------------------------------------------------------
def _make_dispreg_kernel(D, zoom, TR, CHUNK):
    """Kernel over one (D, TR, C) slab -> (TR, C) f32 disparity expectation."""
    disp_vals = [float(d * zoom) for d in range(D)]   # static weights, baked in
    n_full = TR // CHUNK
    rem = TR - n_full * CHUNK

    def kernel(x_ref, o_ref):
        # x_ref : (D, TR, C) block of the cost volume (batch dim squeezed out)
        # o_ref : (TR, C)    f32 output tile
        def do_chunk(r0, nrows):
            sl = pl.ds(r0, nrows)
            if D == 1:
                # Single disparity level has weight 0.0 -> output is zero.
                acc = jnp.zeros((nrows, o_ref.shape[-1]), jnp.float32)
            else:
                # d == 0 has weight 0.0 -> skip that load/mul entirely.
                acc = x_ref[1, sl, :].astype(jnp.float32) * disp_vals[1]
                for d in range(2, D):
                    acc = acc + x_ref[d, sl, :].astype(jnp.float32) * disp_vals[d]
            o_ref[sl, :] = acc.astype(o_ref.dtype)

        # Row chunks keep the f32 accumulator vreg-resident (<= ~128 KiB) so the
        # VALU / load-store work stays free filler under the binding HBM DMA.
        @pl.loop(0, n_full)
        def _(c):
            do_chunk(pl.multiple_of(c * CHUNK, CHUNK), CHUNK)

        if rem > 0:                      # static ragged tail inside the block
            do_chunk(n_full * CHUNK, rem)

    return kernel


# ----------------------------------------------------------------------------
# Generation-aware block / VMEM budget
# ----------------------------------------------------------------------------
def _pick_block_budget():
    """Returns (input_block_bytes, vmem_limit_bytes or None)."""
    try:
        kind = jax.devices()[0].device_kind.lower()
    except Exception:
        kind = ""
    if "v7" in kind:
        # v7x: 3.2 TB/s HBM, only 64 MiB physical VMEM (32 MiB scoped default).
        return 12 << 20, 48 << 20
    if "v6" in kind or "v5p" in kind:
        # v6e / v5p: 128 MiB physical VMEM; 8 MiB blocks amortize per-step overhead.
        return 8 << 20, 64 << 20
    if "v5" in kind:
        # v5e: 16 MiB scoped default; 2x4 MiB (in) + 2x1 MiB (out) already fits.
        return 4 << 20, None
    return 8 << 20, 48 << 20


# ----------------------------------------------------------------------------
# Wrapper
# ----------------------------------------------------------------------------
def disparity_regression(x, maxdisp, zoom, *, block_bytes=None, vmem_limit_bytes=None):
    """Pallas TPU equivalent of `disparityregression(maxdisp, zoom)(x)`.

    x: [B, D, H, W] with D == maxdisp // zoom. Returns float32 [B, 1, H, W].
    """
    B, D, H, W = x.shape
    if maxdisp % zoom != 0 or D != maxdisp // zoom:
        raise ValueError(
            "disparity_regression requires maxdisp %% zoom == 0 and "
            "x.shape[1] == maxdisp // zoom (got D=%d, maxdisp=%d, zoom=%d)"
            % (D, maxdisp, zoom)
        )

    if block_bytes is None or vmem_limit_bytes is None:
        auto_block, auto_vmem = _pick_block_budget()
        block_bytes = block_bytes if block_bytes is not None else auto_block
        vmem_limit_bytes = vmem_limit_bytes if vmem_limit_bytes is not None else auto_vmem

    itemsize = jnp.dtype(x.dtype).itemsize
    out_dtype = jnp.float32
    HW = H * W

    # ---- Spatial layout: never pad the cost volume in the wrapper (a pad op
    #      re-reads + rewrites the whole [B,D,H,W] volume in HBM). ----
    if HW % 128 == 0:
        # Free reshape into a lane-dense (rows, 128) plane.
        rows_total, C = HW // 128, 128
        x_view = x.reshape(B, D, rows_total, C)
    else:
        # Native (H, W) plane with W on the lane axis (tail lanes masked, but
        # zero extra HBM traffic).
        rows_total, C = H, W
        x_view = x

    # ---- Row chunk for the vreg-resident accumulator (~128 KiB of f32). ----
    chunk = max(8, (128 * 1024) // (C * 4))
    chunk = (chunk // 8) * 8
    # ---- Rows per grid block: cap the input slab at ~block_bytes. ----
    tr = max(chunk, (block_bytes // (D * C * itemsize)) // chunk * chunk)
    if tr >= rows_total:
        tr = rows_total               # full extent is always a legal block dim
        chunk = min(chunk, tr)

    # Spatial axis first: it is the long axis and the one that should be split
    # across v7x's two TensorCores (B is typically 1-2 for stereo). The ragged
    # trailing block (rows_total % tr != 0) is clipped by Pallas on writeback.
    grid = (pl.cdiv(rows_total, tr), B)

    cost = pl.CostEstimate(
        flops=2 * B * D * HW,
        transcendentals=0,
        bytes_accessed=B * D * HW * itemsize + B * HW * jnp.dtype(out_dtype).itemsize,
    )

    out = pl.pallas_call(
        _make_dispreg_kernel(D, zoom, tr, chunk),
        out_shape=jax.ShapeDtypeStruct((B, rows_total, C), out_dtype),
        grid_spec=pltpu.PrefetchScalarGridSpec(
            num_scalar_prefetch=0,
            grid=grid,
            in_specs=[
                # One (D, tr, C) slab per (spatial-tile, batch) grid step.
                pl.BlockSpec((None, D, tr, C), lambda n, b: (b, 0, n, 0)),
            ],
            out_specs=pl.BlockSpec((None, tr, C), lambda n, b: (b, n, 0)),
        ),
        compiler_params=pltpu.CompilerParams(
            dimension_semantics=("parallel", "parallel"),
            vmem_limit_bytes=vmem_limit_bytes,
        ),
        cost_estimate=cost,
    )(x_view)

    # Restore NCHW with the kept channel dim (free reshape, no slicing needed).
    return out.reshape(B, 1, H, W)


# ----------------------------------------------------------------------------
# Reference + self-test
# ----------------------------------------------------------------------------
def _reference(x, maxdisp, zoom):
    D = maxdisp // zoom
    disp = jnp.reshape(jnp.arange(0, maxdisp, zoom, dtype=jnp.float32), (1, D, 1, 1))
    return jnp.sum(x.astype(jnp.float32) * disp, axis=1, keepdims=True)


if __name__ == "__main__":
    key = jax.random.PRNGKey(0)
    k1, k2 = jax.random.split(key)

    # --- Case A: H*W multiple of 128 (lane-dense (rows, 128) path) ---
    maxdisp, zoom = 8, 2          # -> D = 4 disparity channels
    B, H, W = 2, 16, 16           # H*W = 256 -> 2 lane-rows
    x = jax.random.uniform(k1, (B, maxdisp // zoom, H, W), dtype=jnp.float32)
    x = jax.nn.softmax(x, axis=1)            # typical caller feeds a softmax volume
    out = jax.block_until_ready(disparity_regression(x, maxdisp, zoom))
    ref = _reference(x, maxdisp, zoom)
    assert out.shape == (B, 1, H, W)
    assert out.dtype == jnp.float32
    np.testing.assert_allclose(np.asarray(out), np.asarray(ref), rtol=1e-5, atol=1e-5)

    # --- Case B: H*W not a multiple of 128 (native (H, W) plane, no padding) ---
    maxdisp2, zoom2 = 6, 2        # -> D = 3
    B2, H2, W2 = 1, 9, 20
    x2 = jax.random.uniform(k2, (B2, maxdisp2 // zoom2, H2, W2), dtype=jnp.float32)
    x2 = jax.nn.softmax(x2, axis=1)
    out2 = jax.block_until_ready(disparity_regression(x2, maxdisp2, zoom2))
    ref2 = _reference(x2, maxdisp2, zoom2)
    assert out2.shape == (B2, 1, H2, W2)
    np.testing.assert_allclose(np.asarray(out2), np.asarray(ref2), rtol=1e-5, atol=1e-5)

    print("KERNEL_OK")
</pallas_src>

<mosaic_0001>
module attributes {stable_mosaic.version = 11 : i64} {
  func.func @kernel(%arg0: i32, %arg1: i32, %arg2: memref<1x4x2x128xf32, #tpu.memory_space<vmem>>, %arg3: memref<1x2x128xf32, #tpu.memory_space<vmem>>) attributes {dimension_semantics = [#tpu.dimension_semantics<parallel>, #tpu.dimension_semantics<parallel>], iteration_bounds = array<i64: 1, 2>, scalar_prefetch = 0 : i64, scratch_operands = 0 : i64, tpu.core_type = #tpu.core_type<tc>, window_params = [{transform_indices = @transform_0, window_bounds = array<i64: 1, 4, 2, 128>}, {transform_indices = @transform_1, window_bounds = array<i64: 1, 2, 128>}]} {
    %c0_i32 = arith.constant 0 : i32
    %c1_i32 = arith.constant 1 : i32
    %0 = arith.muli %c0_i32, %c1_i32 : i32
    %c0_i32_0 = arith.constant 0 : i32
    %1 = arith.addi %c0_i32_0, %0 : i32
    %c2_i32 = arith.constant 2 : i32
    %2 = arith.muli %1, %c2_i32 : i32
    %3 = tpu.assume_multiple %2, 2 : i32
    %c0 = arith.constant 0 : index
    %c1 = arith.constant 1 : index
    %4 = arith.index_cast %3 : i32 to index
    %c0_1 = arith.constant 0 : index
    %5 = vector.load %arg2[%c0, %c1, %4, %c0_1] : memref<1x4x2x128xf32, #tpu.memory_space<vmem>>, vector<1x1x2x128xf32>
    %6 = vector.shape_cast %5 : vector<1x1x2x128xf32> to vector<2x128xf32>
    %cst = arith.constant 2.000000e+00 : f32
    %7 = vector.broadcast %cst : f32 to vector<2x128xf32>
    %8 = arith.mulf %6, %7 : vector<2x128xf32>
    %c0_2 = arith.constant 0 : index
    %c2 = arith.constant 2 : index
    %9 = arith.index_cast %3 : i32 to index
    %c0_3 = arith.constant 0 : index
    %10 = vector.load %arg2[%c0_2, %c2, %9, %c0_3] : memref<1x4x2x128xf32, #tpu.memory_space<vmem>>, vector<1x1x2x128xf32>
    %11 = vector.shape_cast %10 : vector<1x1x2x128xf32> to vector<2x128xf32>
    %cst_4 = arith.constant 4.000000e+00 : f32
    %12 = vector.broadcast %cst_4 : f32 to vector<2x128xf32>
    %13 = arith.mulf %11, %12 : vector<2x128xf32>
    %14 = arith.addf %8, %13 : vector<2x128xf32>
    %c0_5 = arith.constant 0 : index
    %c3 = arith.constant 3 : index
    %15 = arith.index_cast %3 : i32 to index
    %c0_6 = arith.constant 0 : index
    %16 = vector.load %arg2[%c0_5, %c3, %15, %c0_6] : memref<1x4x2x128xf32, #tpu.memory_space<vmem>>, vector<1x1x2x128xf32>
    %17 = vector.shape_cast %16 : vector<1x1x2x128xf32> to vector<2x128xf32>
    %cst_7 = arith.constant 6.000000e+00 : f32
    %18 = vector.broadcast %cst_7 : f32 to vector<2x128xf32>
    %19 = arith.mulf %17, %18 : vector<2x128xf32>
    %20 = arith.addf %14, %19 : vector<2x128xf32>
    %c0_8 = arith.constant 0 : index
    %21 = arith.index_cast %3 : i32 to index
    %c0_9 = arith.constant 0 : index
    %22 = vector.load %arg3[%c0_8, %21, %c0_9] : memref<1x2x128xf32, #tpu.memory_space<vmem>>, vector<1x2x128xf32>
    %23 = vector.shape_cast %22 : vector<1x2x128xf32> to vector<2x128xf32>
    %24 = vector.shape_cast %20 : vector<2x128xf32> to vector<1x2x128xf32>
    tpu.vector_store %arg3[%c0_8, %21, %c0_9], %24 {strides = array<i32>} : memref<1x2x128xf32, #tpu.memory_space<vmem>>, vector<1x2x128xf32>,
    %c1_i32_10 = arith.constant 1 : i32
    return
  }
  func.func @transform_0(%arg0: i32, %arg1: i32) -> (i32, i32, i32, i32) {
    %c0_i32 = arith.constant 0 : i32
    %c0_i32_0 = arith.constant 0 : i32
    %c0_i32_1 = arith.constant 0 : i32
    return %arg1, %c0_i32, %arg0, %c0_i32_0 : i32, i32, i32, i32
  }
  func.func @transform_1(%arg0: i32, %arg1: i32) -> (i32, i32, i32) {
    %c0_i32 = arith.constant 0 : i32
    %c0_i32_0 = arith.constant 0 : i32
    return %arg1, %arg0, %c0_i32 : i32, i32, i32
  }
}

</mosaic_0001>

<llo_original>
// kernel: tpu_custom_call.1
$region0: #{tpu_custom_call.1}
  #allocation0 [shape = 'u32[]', space=smem, size = 0x4, offset = 0x4, fixed_abs, tag = 'smem constant byte address 0x4 - core index']
  #allocation1 [shape = 'u32[144,128]{1,0:T(1,128)}', space=vmem, size = 0x12000, scoped, tag = 'internal scratch']
  %s0 = inlined_call_operand.hbm [shape: f32[2,4,2,128], index: 0, kind: input, shape index: {}]
  %s1 = inlined_call_operand.hbm [shape: f32[2,2,128], index: 1, kind: output, shape index: {}]
  %s2 = sld [smem:[#allocation0]]
  $region41: #{tpu_custom_call.1} parent=0
    _
  %s4 = ssub.s32 1, %s2
  %s5 = scalar_select 0, %s4, %s2
  $region1: #{tpu_custom_call.1} parent=0
    #allocation2 [shape = 'u8[8192]{0}', space=vmem, size = 0x2000, scoped, tag = 'input window, operand 0']
    #allocation3 [shape = 's32[2]{0}', space=sflag, size = 0x8, scoped, tag = 'scoped memory for tpu_custom_call.1']
    #allocation4 [shape = 's32[2]{0}', space=sflag, size = 0x8, scoped, tag = 'scoped memory for tpu_custom_call.1']
    #allocation5 [shape = 'u8[2048]{0}', space=vmem, size = 0x800, scoped, tag = 'output window, operand 0']
    %6 = vsyncpa [#allocation3], 0
    %s7 = scalar_lea.sflag [#allocation3], 1
    %8 = vsyncpa %s7, 0
    %9 = vsyncpa [#allocation4], 0
    %s10 = scalar_lea.sflag [#allocation4], 1
    %11 = vsyncpa %s10, 0
    loop: start=0, step=1, limit=4
    $region2: #{tpu_custom_call.1} parent=1 // loop_pre_header
      _
    $region3: #{tpu_custom_call.1} parent=1 // loop_header
      %s13 = sphi 0, %s17
      %p14 = scmp.ge.s32.totalorder %s13, 4
      %s20 = sphi 0, %s32
      %s21 = sphi 0, %s28
      %s22 = sphi 0, %s20
      %s23 = sphi 0, %s21
      %s24 = sphi 0, %s22
      %s25 = sphi 0, %s23
      %s37 = sphi 0, %s39
      %s40 = sphi 0, %s37
      %s41 = sphi 0, %s40
      %s57 = sphi 0, %s41
      %s65 = sphi 0, %s67
      %s68 = sphi 0, %s65
      %s69 = sphi 0, %s68
      %s85 = sphi 0, %s69
    $region4: #{tpu_custom_call.1} parent=1 // loop_header_branch
      %16 = sbr.rel (%p14) target = $region8
    $region5: #{tpu_custom_call.1} parent=1 // loop_body
      %s18 = ssub.s32 %s13, 1
      %s19 = ssub.s32 %s13, 2
      %s26 = sadd.s32 1, %s21
      %p27 = scmp.ge.s32.totalorder %s26, 2
      %s28 = scalar_select %p27, 0, %s26
      %s29 = sadd.s32 1, %s20
      %s30 = scalar_select %p27, %s29, %s20
      %p31 = scmp.ge.s32.totalorder %s30, 1
      %s32 = scalar_select %p31, 0, %s30
      %s33 = ssub.s32 %s21, %s28
      %s34 = ssub.s32 %s20, %s32
      %s35 = sor.u32 %s33, %s34
      %p36 = scmp.eq.s32.totalorder %s35, 0
      %s38 = sadd.s32 %s37, 1
      %s39 = scalar_select %p36, %s37, %s38
      %p42 = pneg %p36
      %p43 = scmp.eq.s32.totalorder %s13, 1
      %p44 = por %p42, %p43
      %p45 = scmp.ne.s32.totalorder %s37, %s40
      %p46 = scmp.eq.s32.totalorder %s13, 0
      %p47 = por %p45, %p46
      %p48 = scmp.ne.s32.totalorder %s37, %s40
      %p49 = scmp.eq.s32.totalorder %s18, 1
      %p50 = por %p48, %p49
      %p51 = scmp.ne.s32.totalorder %s40, %s41
      %p52 = scmp.eq.s32.totalorder %s18, 0
      %p53 = por %p51, %p52
      %p54 = scmp.ne.s32.totalorder %s40, %s41
      %p55 = scmp.eq.s32.totalorder %s19, 1
      %p56 = por %p54, %p55
      %p58 = scmp.ne.s32.totalorder %s41, %s57
      %p59 = scmp.eq.s32.totalorder %s19, 0
      %p60 = por %p58, %p59
      %s61 = ssub.s32 %s21, %s28
      %s62 = ssub.s32 %s20, %s32
      %s63 = sor.u32 %s61, %s62
      %p64 = scmp.eq.s32.totalorder %s63, 0
      %s66 = sadd.s32 %s65, 1
      %s67 = scalar_select %p64, %s65, %s66
      %p70 = pneg %p64
      %p71 = scmp.eq.s32.totalorder %s13, 1
      %p72 = por %p70, %p71
      %p73 = scmp.ne.s32.totalorder %s65, %s68
      %p74 = scmp.eq.s32.totalorder %s13, 0
      %p75 = por %p73, %p74
      %p76 = scmp.ne.s32.totalorder %s65, %s68
      %p77 = scmp.eq.s32.totalorder %s18, 1
      %p78 = por %p76, %p77
      %p79 = scmp.ne.s32.totalorder %s68, %s69
      %p80 = scmp.eq.s32.totalorder %s18, 0
      %p81 = por %p79, %p80
      %p82 = scmp.ne.s32.totalorder %s68, %s69
      %p83 = scmp.eq.s32.totalorder %s19, 1
      %p84 = por %p82, %p83
      %p86 = scmp.ne.s32.totalorder %s69, %s85
      %p87 = scmp.eq.s32.totalorder %s19, 0
      %p88 = por %p86, %p87
      %p89 = scmp.le.s32.totalorder 1, %s13
      %p90 = scmp.lt.s32.totalorder %s13, 3
      %p91 = pnand %p89, %p90
      %p92 = pneg %p91
      // Predicated region
      $region9: #{tpu_custom_call.1} parent=5 // pred_check
        _
      $region10: #{tpu_custom_call.1} parent=5 // pred_check_branch
        %94 = sbr.rel (%p91) target = $region12
      $region11: #{tpu_custom_call.1} parent=5 // pred_region
        %s95 = ssub.s32 %s13, 1
      $region12: #{tpu_custom_call.1} parent=5 // pred_fallthru
        _
      %p96 = scmp.lt.s32.totalorder %s13, 2
      // Predicated region
      $region13: #{tpu_custom_call.1} parent=5 // pred_check
        %p97 = pneg %p96
      $region14: #{tpu_custom_call.1} parent=5 // pred_check_branch
        %99 = sbr.rel (%p97) target = $region16
      $region15: #{tpu_custom_call.1} parent=5 // pred_region
        // Predicated region
        $region17: #{tpu_custom_call.1} parent=15 // pred_check
          %p100 = pneg %p47
        $region18: #{tpu_custom_call.1} parent=15 // pred_check_branch
          %102 = sbr.rel (%p100) target = $region20
        $region19: #{tpu_custom_call.1} parent=15 // pred_region
          %s103 = sand.u32 %s37, 1
          %s104 = scalar_lea.sflag [#allocation3], %s103
          %s105 = sand.u32 %s37, 1
          %s106 = smul.addr %s105, 8
          %s107 = scalar_lea.vmem [#allocation2], %s106
          %s109 = ssub.s32 128, 128
          %110 = vsyncadd %s104, %s109
          %s111 = smul.addr %s21, 4
          %s112 = sadd.s32 %s20, %s111
          %s113 = smul.addr %s112, 32
          %s114 = scalar_lea.hbm %s0, %s113
          %s115 = sshll.u32 %s107, 4
          %s116 = int_to_ptr.vmem [resolvable:$true] %s115
          %121 = dma.hbm_to_vmem [thread:$0]  %s114, 128, %s116, %s104, 32, 32, 2
        $region20: #{tpu_custom_call.1} parent=15 // pred_fallthru
          _
      $region16: #{tpu_custom_call.1} parent=5 // pred_fallthru
        _
      %p122 = scmp.le.s32.totalorder 1, %s13
      %p123 = scmp.lt.s32.totalorder %s13, 3
      %p124 = pnand %p122, %p123
      %p125 = pneg %p124
      // Predicated region
      $region21: #{tpu_custom_call.1} parent=5 // pred_check
        _
      $region22: #{tpu_custom_call.1} parent=5 // pred_check_branch
        %127 = sbr.rel (%p124) target = $region24
      $region23: #{tpu_custom_call.1} parent=5 // pred_region
        %s128 = ssub.s32 %s13, 1
        %s129 = sand.u32 %s40, 1
        %s130 = scalar_lea.sflag [#allocation3], %s129
        %s131 = sand.u32 %s40, 1
        %s132 = smul.addr %s131, 8
        %s133 = scalar_lea.vmem [#allocation2], %s132
        // Predicated region
        $region25: #{tpu_custom_call.1} parent=23 // pred_check
          %p134 = pneg %p53
        $region26: #{tpu_custom_call.1} parent=23 // pred_check_branch
          %136 = sbr.rel (%p134) target = $region28
        $region27: #{tpu_custom_call.1} parent=23 // pred_region
          %137 = dma.done %s130, 128
        $region28: #{tpu_custom_call.1} parent=23 // pred_fallthru
          _
        %s138 = sand.u32 %s40, 1
        %s139 = scalar_lea.sflag [#allocation3], %s138
        %s140 = sand.u32 %s40, 1
        %s141 = smul.addr %s140, 8
        %s142 = scalar_lea.vmem [#allocation2], %s141
        %p143 = pneg %p53
        %p144 = pneg %p50
        %p145 = pneg %p81
        %p146 = pneg %p78
        %s147 = sand.u32 %s68, 1
        %s148 = scalar_lea.sflag [#allocation4], %s147
        %s149 = sand.u32 %s68, 1
        %s150 = smul.addr %s149, 2
        %s151 = scalar_lea.vmem [#allocation5], %s150
        %s152 = sadd.s32 0, 2
        %s153 = scalar_lea.vmem %s133, %s152 [#allocation2]
        %v154 = vld [vmem:[%s153] sm:$0x3]
        %v155 = vmul.f32 %v154, 2.0
        %s156 = sadd.s32 0, 4
        %s157 = scalar_lea.vmem %s133, %s156 [#allocation2]
        %v158 = vld [vmem:[%s157] sm:$0x3]
        %v159 = vmul.f32 %v158, 4.0
        %v160 = vadd.f32 %v155, %v159
        %s161 = sadd.s32 0, 6
        %s162 = scalar_lea.vmem %s133, %s161 [#allocation2]
        %v163 = vld [vmem:[%s162] sm:$0x3]
        %v164 = vmul.f32 %v163, 6.0
        %v165 = vadd.f32 %v160, %v164
        %166 = vst [vmem:[%s151] sm:$0x3] %v165
        %s167 = sand.u32 %s68, 1
        %s168 = scalar_lea.sflag [#allocation4], %s167
        %s169 = sand.u32 %s68, 1
        %s170 = smul.addr %s169, 2
        %s171 = scalar_lea.vmem [#allocation5], %s170
        // Predicated region
        $region29: #{tpu_custom_call.1} parent=23 // pred_check
          %p172 = pneg %p78
        $region30: #{tpu_custom_call.1} parent=23 // pred_check_branch
          %174 = sbr.rel (%p172) target = $region32
        $region31: #{tpu_custom_call.1} parent=23 // pred_region
          %s176 = ssub.s32 32, 32
          %177 = vsyncadd %s168, %s176
          %s178 = sadd.s32 %s22, %s23
          %s179 = smul.addr %s178, 32
          %s180 = scalar_lea.hbm %s1, %s179
          %s182 = sshll.u32 %s171, 4
          %s183 = int_to_ptr.vmem [resolvable:$true] %s182
          %185 = dma.vmem_to_hbm [thread:$0]  %s183, 32, %s180, %s168
        $region32: #{tpu_custom_call.1} parent=23 // pred_fallthru
          _
      $region24: #{tpu_custom_call.1} parent=5 // pred_fallthru
        _
      %p186 = scmp.le.s32.totalorder 2, %s13
      // Predicated region
      $region33: #{tpu_custom_call.1} parent=5 // pred_check
        %p187 = pneg %p186
      $region34: #{tpu_custom_call.1} parent=5 // pred_check_branch
        %189 = sbr.rel (%p187) target = $region36
      $region35: #{tpu_custom_call.1} parent=5 // pred_region
        %s190 = ssub.s32 %s13, 2
        // Predicated region
        $region37: #{tpu_custom_call.1} parent=35 // pred_check
          %p191 = pneg %p84
        $region38: #{tpu_custom_call.1} parent=35 // pred_check_branch
          %193 = sbr.rel (%p191) target = $region40
        $region39: #{tpu_custom_call.1} parent=35 // pred_region
          %s194 = sand.u32 %s69, 1
          %s195 = scalar_lea.sflag [#allocation4], %s194
          %s196 = sand.u32 %s69, 1
          %s197 = smul.addr %s196, 2
          %s198 = scalar_lea.vmem [#allocation5], %s197
          %199 = dma.done %s195, 32
        $region40: #{tpu_custom_call.1} parent=35 // pred_fallthru
          _
      $region36: #{tpu_custom_call.1} parent=5 // pred_fallthru
        _
    $region6: #{tpu_custom_call.1} parent=1 // loop_footer
      %s17 = sadd.s32 1, %s13
    $region7: #{tpu_custom_call.1} parent=1 // loop_footer_branch
      %12 = sbr.rel target = $region3
    $region8: #{tpu_custom_call.1} parent=1 // loop_exit
      _
    %200 = vsyncpa [#allocation3], 1
    %s201 = scalar_lea.sflag [#allocation3], 1
    %202 = vsyncpa %s201, 1
    %203 = vsyncpa [#allocation4], 1
    %s204 = scalar_lea.sflag [#allocation4], 1
    %205 = vsyncpa %s204, 1

</llo_original>
